<compile_context>
chip_gen: v7x
topology: tpu7x:2x2x1
jax: 0.10.0
libtpu: 0.0.40
codegen_flags: <defaults>
</compile_context>

<pallas_src>
import math
from functools import partial

import jax
import jax.numpy as jnp
from jax import lax
from jax.experimental import pallas as pl
from jax.experimental.pallas import tpu as pltpu

EMB_DIM = 20
SEQ_LEN = 512          # fixed by nn.Linear(512, 512) / the MLP in the module
HIDDEN = 32
KSIZE = 9
NUM_CNN_LAYERS = 3
MLP_HID = 4096
OUT_DIM = 128
LN_EPS = 1e-5

_SQRT2 = math.sqrt(2.0)


def _apply_act(x, act):
    if act == "gelu":        # exact (erf) GELU, matching F.gelu default
        return 0.5 * x * (1.0 + lax.erf(x / _SQRT2))
    if act == "sigmoid":
        return jax.nn.sigmoid(x)
    return x


def _blk(dim, pref):
    """Largest block <= pref that evenly divides dim (dim itself if small)."""
    if dim <= pref:
        return dim
    b = pref
    while dim % b != 0:
        b //= 2
    return b


# --------------------- tiled matmul + bias + activation ---------------------
def _matmul_kernel(a_ref, b_ref, bias_ref, o_ref, acc_ref, *, act):
    @pl.when(pl.program_id(2) == 0)
    def _():
        acc_ref[...] = jnp.zeros_like(acc_ref)

    acc_ref[...] += jnp.dot(a_ref[...], b_ref[...],
                            preferred_element_type=jnp.float32)

    @pl.when(pl.program_id(2) == pl.num_programs(2) - 1)
    def _():
        out = acc_ref[...] + bias_ref[...]
        o_ref[...] = _apply_act(out, act).astype(o_ref.dtype)


def matmul_bias_act(a, w, bias, act="none"):
    # a: (M, K), w: (K, N)  (== torch Linear weight transposed), bias: (N,)
    M, K = a.shape
    K2, N = w.shape
    assert K == K2
    if w.dtype == jnp.bfloat16:          # stream bf16 weights, accumulate f32
        a = a.astype(jnp.bfloat16)
    tm = _blk(M, 256)
    tn = _blk(N, 2048)                   # large weight tiles: few grid steps,
    tk = _blk(K, 2048)                   # HBM-roofline weight streaming
    cost = pl.CostEstimate(
        flops=2 * M * K * N,
        transcendentals=M * N if act in ("gelu", "sigmoid") else 0,
        bytes_accessed=int(M * K * a.dtype.itemsize + K * N * w.dtype.itemsize
                           + N * 4 + M * N * 4))
    return pl.pallas_call(
        partial(_matmul_kernel, act=act),
        out_shape=jax.ShapeDtypeStruct((M, N), jnp.float32),
        grid_spec=pltpu.PrefetchScalarGridSpec(
            num_scalar_prefetch=0,
            grid=(M // tm, N // tn, K // tk),
            in_specs=[
                pl.BlockSpec((tm, tk), lambda i, j, k: (i, k)),
                pl.BlockSpec((tk, tn), lambda i, j, k: (k, j)),
                pl.BlockSpec((1, tn), lambda i, j, k: (0, j)),
            ],
            out_specs=pl.BlockSpec((tm, tn), lambda i, j, k: (i, j)),
            scratch_shapes=[pltpu.VMEM((tm, tn), jnp.float32)],
        ),
        compiler_params=pltpu.CompilerParams(
            dimension_semantics=("parallel", "parallel", "arbitrary"),
            vmem_limit_bytes=32 * 1024 * 1024),
        cost_estimate=cost,
    )(a, w, bias.reshape(1, N).astype(jnp.float32))


# --------------------- conv helpers (NCL, 'same' padding, dilation 1) -------
def _stack_taps(x_ncl, ksize):
    """(B, C, L) -> (B, K, C, L) where taps[:, k, :, l] = x_padded[:, :, l + k]."""
    pad = (ksize - 1) // 2
    L = x_ncl.shape[2]
    xp = jnp.pad(x_ncl, ((0, 0), (0, 0), (pad, pad)))
    return jnp.stack([xp[:, :, k:k + L] for k in range(ksize)], axis=1)


def _conv1d_kernel(x_ref, w_ref, b_ref, o_ref, *, ksize, act):
    # x_ref: (1, K, Cin, L) shifted taps; w_ref: (K, Cout, Cin); b_ref: (Cout, 1)
    cout, L = o_ref.shape[1], o_ref.shape[2]
    acc = jnp.zeros((cout, L), jnp.float32)
    for k in range(ksize):                 # K lane-dense (Cout,Cin)x(Cin,L) dots
        acc += jnp.dot(w_ref[k], x_ref[0, k].astype(jnp.float32),
                       preferred_element_type=jnp.float32)
    acc = acc + b_ref[...]
    o_ref[0] = _apply_act(acc, act).astype(o_ref.dtype)


def conv1d_ncl(x_ncl, w_koi, bias_c1, act="none"):
    # x_ncl: (B, Cin, L); w_koi: (K, Cout, Cin); bias_c1: (Cout, 1)
    B, Cin, L = x_ncl.shape
    K, Cout, _ = w_koi.shape
    taps = _stack_taps(x_ncl, K)
    return pl.pallas_call(
        partial(_conv1d_kernel, ksize=K, act=act),
        out_shape=jax.ShapeDtypeStruct((B, Cout, L), jnp.float32),
        grid_spec=pltpu.PrefetchScalarGridSpec(
            num_scalar_prefetch=0,
            grid=(B,),
            in_specs=[
                pl.BlockSpec((1, K, Cin, L), lambda b: (b, 0, 0, 0)),
                pl.BlockSpec((K, Cout, Cin), lambda b: (0, 0, 0)),
                pl.BlockSpec((Cout, 1), lambda b: (0, 0)),
            ],
            out_specs=pl.BlockSpec((1, Cout, L), lambda b: (b, 0, 0)),
        ),
        compiler_params=pltpu.CompilerParams(
            dimension_semantics=("parallel",)),
    )(taps, w_koi, bias_c1)


# --------------------- fused gated block: LN -> conv_h/conv_g -> h*g + x ----
def _gated_block_kernel(x_ref, w_ref, b_ref, gam_ref, bet_ref, o_ref,
                        *, ksize, eps):
    # x_ref: (1, K, C, L) shifted taps of x;  w_ref: (K, 2C, C) fused h/g conv
    # b_ref: (2C, 1); gam_ref/bet_ref: (C, 1)    output: (1, C, L)
    C, L = o_ref.shape[1], o_ref.shape[2]
    pad = (ksize - 1) // 2
    gam = gam_ref[...]
    bet = bet_ref[...]
    col = lax.broadcasted_iota(jnp.int32, (1, L), 1)
    acc = jnp.zeros((2 * C, L), jnp.float32)
    for k in range(ksize):
        xk = x_ref[0, k].astype(jnp.float32)               # (C, L)
        # LayerNorm over channels (position-wise), recomputed per shifted tap
        mu = jnp.mean(xk, axis=0, keepdims=True)
        xc = xk - mu
        var = jnp.mean(xc * xc, axis=0, keepdims=True)
        tk = xc * lax.rsqrt(var + eps) * gam + bet
        # zero the 'same'-padding halo columns of this tap
        lo, hi = max(0, pad - k), min(L, L + pad - k)
        if lo > 0 or hi < L:
            tk = jnp.where((col >= lo) & (col < hi), tk, 0.0)
        acc += jnp.dot(w_ref[k], tk, preferred_element_type=jnp.float32)
    acc = acc + b_ref[...]
    h = _apply_act(acc[:C, :], "gelu")
    g = _apply_act(acc[C:, :], "sigmoid")
    x_res = x_ref[0, pad].astype(jnp.float32)              # tap with shift 0 == x
    o_ref[0] = (h * g + x_res).astype(o_ref.dtype)


def gated_block(x_ncl, w_fused, b_fused, gamma_c1, beta_c1, eps=LN_EPS):
    B, C, L = x_ncl.shape
    K = w_fused.shape[0]
    taps = _stack_taps(x_ncl, K)
    return pl.pallas_call(
        partial(_gated_block_kernel, ksize=K, eps=eps),
        out_shape=jax.ShapeDtypeStruct((B, C, L), jnp.float32),
        grid_spec=pltpu.PrefetchScalarGridSpec(
            num_scalar_prefetch=0,
            grid=(B,),
            in_specs=[
                pl.BlockSpec((1, K, C, L), lambda b: (b, 0, 0, 0)),
                pl.BlockSpec((K, 2 * C, C), lambda b: (0, 0, 0)),
                pl.BlockSpec((2 * C, 1), lambda b: (0, 0)),
                pl.BlockSpec((C, 1), lambda b: (0, 0)),
                pl.BlockSpec((C, 1), lambda b: (0, 0)),
            ],
            out_specs=pl.BlockSpec((1, C, L), lambda b: (b, 0, 0)),
        ),
        compiler_params=pltpu.CompilerParams(
            dimension_semantics=("parallel",)),
    )(taps, w_fused, b_fused, gamma_c1, beta_c1)


# --------------------- LayerNorm over last dim (final MLP LN(128)) ----------
def _layernorm_kernel(x_ref, g_ref, b_ref, o_ref, *, eps):
    x = x_ref[...].astype(jnp.float32)
    mu = jnp.mean(x, axis=-1, keepdims=True)
    xc = x - mu
    var = jnp.mean(xc * xc, axis=-1, keepdims=True)
    inv = lax.rsqrt(var + eps)
    o_ref[...] = (xc * inv * g_ref[...] + b_ref[...]).astype(o_ref.dtype)


def layernorm(x2d, gamma, beta, eps=LN_EPS):
    R, C = x2d.shape
    tr = _blk(R, 256)
    return pl.pallas_call(
        partial(_layernorm_kernel, eps=eps),
        out_shape=jax.ShapeDtypeStruct((R, C), jnp.float32),
        grid_spec=pltpu.PrefetchScalarGridSpec(
            num_scalar_prefetch=0,
            grid=(R // tr,),
            in_specs=[
                pl.BlockSpec((tr, C), lambda i: (i, 0)),
                pl.BlockSpec((1, C), lambda i: (0, 0)),
                pl.BlockSpec((1, C), lambda i: (0, 0)),
            ],
            out_specs=pl.BlockSpec((tr, C), lambda i: (i, 0)),
        ),
        compiler_params=pltpu.CompilerParams(
            dimension_semantics=("parallel",)),
    )(x2d, gamma.reshape(1, C), beta.reshape(1, C))


# --------------------- parameters (deterministic, synthetic) ----------------
def init_params(key):
    def nrm(k, shape, scale=0.02):
        return (scale * jax.random.normal(k, shape)).astype(jnp.float32)

    keys = jax.random.split(key, 32)
    p = {}
    p["fc_w"] = nrm(keys[0], (SEQ_LEN, SEQ_LEN))            # (in, out)
    p["fc_b"] = nrm(keys[1], (SEQ_LEN,))
    p["lin1_w"] = nrm(keys[2], (KSIZE, HIDDEN, EMB_DIM))    # (k, cout, cin)
    p["lin1_b"] = nrm(keys[3], (HIDDEN, 1))
    # Only convs[0..2] / gates[0..2] are used by the reference forward
    # (all dilation 1, padding 4).  Fuse conv/gate weights along Cout.
    conv_w = [nrm(keys[4 + i], (KSIZE, HIDDEN, HIDDEN)) for i in range(3)]
    gate_w = [nrm(keys[7 + i], (KSIZE, HIDDEN, HIDDEN)) for i in range(3)]
    conv_b = [nrm(keys[10 + i], (HIDDEN, 1)) for i in range(3)]
    gate_b = [nrm(keys[13 + i], (HIDDEN, 1)) for i in range(3)]
    p["block_w"] = [jnp.concatenate([conv_w[i], gate_w[i]], axis=1)
                    for i in range(3)]                      # (K, 64, 32)
    p["block_b"] = [jnp.concatenate([conv_b[i], gate_b[i]], axis=0)
                    for i in range(3)]                      # (64, 1)
    p["norm_g"] = [jnp.ones((HIDDEN, 1), jnp.float32) for _ in range(3)]
    p["norm_b"] = [jnp.zeros((HIDDEN, 1), jnp.float32) for _ in range(3)]
    p["lin2_w"] = nrm(keys[16], (KSIZE, HIDDEN // 2, HIDDEN))
    p["lin2_b"] = nrm(keys[17], (HIDDEN // 2, 1))
    flat = HIDDEN * SEQ_LEN // 2
    # MLP weights stored/streamed in bf16; matmul accumulates in f32.
    p["mlp1_w"] = nrm(keys[18], (flat, MLP_HID)).astype(jnp.bfloat16)
    p["mlp1_b"] = nrm(keys[19], (MLP_HID,))
    p["mlp2_w"] = nrm(keys[20], (MLP_HID, MLP_HID)).astype(jnp.bfloat16)
    p["mlp2_b"] = nrm(keys[21], (MLP_HID,))
    p["mlp3_w"] = nrm(keys[22], (MLP_HID, OUT_DIM)).astype(jnp.bfloat16)
    p["mlp3_b"] = nrm(keys[23], (OUT_DIM,))
    p["mlp_ln_g"] = jnp.ones((OUT_DIM,), jnp.float32)
    p["mlp_ln_b"] = jnp.zeros((OUT_DIM,), jnp.float32)
    return p


# --------------------- forward ----------------------------------------------
def gcnn_forward(params, seq_inputs, seq_masks):
    del seq_masks  # unused by the reference forward
    B, L = seq_inputs.shape
    assert L == SEQ_LEN

    # OnehotEmbedding + permute(0,2,1): build directly in NCL -> (B, 20, L)
    emb_ncl = jax.nn.one_hot(seq_inputs, EMB_DIM + 1, axis=1,
                             dtype=jnp.float32)[:, 1:, :]

    # fc: Linear(512, 512) along the length dim (rows = (b, channel) pairs)
    x = matmul_bias_act(emb_ncl.reshape(B * EMB_DIM, L),
                        params["fc_w"], params["fc_b"], act="none")
    x = x.reshape(B, EMB_DIM, L)

    # linear1 conv + GELU -> (B, 32, L)
    x = conv1d_ncl(x, params["lin1_w"], params["lin1_b"], act="gelu")

    # fused gated CNN blocks (LayerNorm + conv_h + conv_g + h*g + x)
    for i in range(NUM_CNN_LAYERS):
        x = gated_block(x, params["block_w"][i], params["block_b"][i],
                        params["norm_g"][i], params["norm_b"][i])

    # linear2 conv -> (B, 16, L)
    x = conv1d_ncl(x, params["lin2_w"], params["lin2_b"], act="none")

    # PyTorch flattens in NCL order: (B, 16, 512).view(B, -1); we are already NCL
    x_flat = x.reshape(B, -1)                               # (B, 8192)

    # MLP: Linear -> GELU -> Linear -> GELU -> Linear -> LayerNorm(128)
    h1 = matmul_bias_act(x_flat, params["mlp1_w"], params["mlp1_b"], act="gelu")
    h2 = matmul_bias_act(h1, params["mlp2_w"], params["mlp2_b"], act="gelu")
    h3 = matmul_bias_act(h2, params["mlp3_w"], params["mlp3_b"], act="none")
    out = layernorm(h3, params["mlp_ln_g"], params["mlp_ln_b"])
    return out


if __name__ == "__main__":
    key = jax.random.PRNGKey(0)
    pkey, dkey = jax.random.split(key)
    params = init_params(pkey)

    B = 2
    seq_inputs = jax.random.randint(dkey, (B, SEQ_LEN), 0, EMB_DIM + 1,
                                    dtype=jnp.int32)
    seq_masks = jnp.ones((B, SEQ_LEN), jnp.float32)   # ignored, as in PyTorch

    out = gcnn_forward(params, seq_inputs, seq_masks)
    out = jax.block_until_ready(out)
    assert out.shape == (B, OUT_DIM) and out.dtype == jnp.float32
    assert bool(jnp.all(jnp.isfinite(out)))
    print("KERNEL_OK")
</pallas_src>

<mosaic_0001>
module attributes {stable_mosaic.version = 11 : i64} {
  func.func @_matmul_kernel(%arg0: i32, %arg1: i32, %arg2: i32, %arg3: memref<40x512xf32, #tpu.memory_space<vmem>>, %arg4: memref<512x512xf32, #tpu.memory_space<vmem>>, %arg5: memref<1x512xf32, #tpu.memory_space<vmem>>, %arg6: memref<40x512xf32, #tpu.memory_space<vmem>>, %arg7: memref<40x512xf32, #tpu.memory_space<vmem>>) attributes {dimension_semantics = [#tpu.dimension_semantics<parallel>, #tpu.dimension_semantics<parallel>, #tpu.dimension_semantics<arbitrary>], iteration_bounds = array<i64: 1, 1, 1>, scalar_prefetch = 0 : i64, scratch_operands = 1 : i64, tpu.core_type = #tpu.core_type<tc>, window_params = [{transform_indices = @transform_0, window_bounds = array<i64: 40, 512>}, {transform_indices = @transform_1, window_bounds = array<i64: 512, 512>}, {transform_indices = @transform_2, window_bounds = array<i64: 1, 512>}, {transform_indices = @transform_3, window_bounds = array<i64: 40, 512>}]} {
    %c0_i32 = arith.constant 0 : i32
    %0 = arith.cmpi eq, %arg2, %c0_i32 : i32
    %1 = arith.extui %0 : i1 to i32
    %c0_i32_0 = arith.constant 0 : i32
    %2 = arith.cmpi ne, %1, %c0_i32_0 : i32
    scf.if %2 {
      %cst_10 = arith.constant 0.000000e+00 : f32
      %12 = vector.broadcast %cst_10 : f32 to vector<40x512xf32>
      %c0_11 = arith.constant 0 : index
      %c0_12 = arith.constant 0 : index
      %13 = vector.load %arg7[%c0_11, %c0_12] : memref<40x512xf32, #tpu.memory_space<vmem>>, vector<40x512xf32>
      tpu.vector_store %arg7[%c0_11, %c0_12], %12 {strides = array<i32>} : memref<40x512xf32, #tpu.memory_space<vmem>>, vector<40x512xf32>,
    } else {
    }
    %c0 = arith.constant 0 : index
    %c0_1 = arith.constant 0 : index
    %3 = vector.load %arg7[%c0, %c0_1] : memref<40x512xf32, #tpu.memory_space<vmem>>, vector<40x512xf32>
    %c0_2 = arith.constant 0 : index
    %c0_3 = arith.constant 0 : index
    %4 = vector.load %arg3[%c0_2, %c0_3] : memref<40x512xf32, #tpu.memory_space<vmem>>, vector<40x512xf32>
    %c0_4 = arith.constant 0 : index
    %c0_5 = arith.constant 0 : index
    %5 = vector.load %arg4[%c0_4, %c0_5] : memref<512x512xf32, #tpu.memory_space<vmem>>, vector<512x512xf32>
    %cst = arith.constant dense<0.000000e+00> : vector<40x512xf32>
    %6 = tpu.matmul %4, %5, %cst {dimension_numbers = #tpu.dot_dimension_numbers<[1], [0], [0], [1], [0, 0, 1, 1], [], []>} : vector<40x512xf32>, vector<512x512xf32>, vector<40x512xf32> -> vector<40x512xf32>
    %7 = arith.addf %3, %6 : vector<40x512xf32>
    %c0_6 = arith.constant 0 : index
    %c0_7 = arith.constant 0 : index
    %8 = vector.load %arg7[%c0_6, %c0_7] : memref<40x512xf32, #tpu.memory_space<vmem>>, vector<40x512xf32>
    tpu.vector_store %arg7[%c0_6, %c0_7], %7 {strides = array<i32>} : memref<40x512xf32, #tpu.memory_space<vmem>>, vector<40x512xf32>,
    %c0_i32_8 = arith.constant 0 : i32
    %9 = arith.cmpi eq, %arg2, %c0_i32_8 : i32
    %10 = arith.extui %9 : i1 to i32
    %c0_i32_9 = arith.constant 0 : i32
    %11 = arith.cmpi ne, %10, %c0_i32_9 : i32
    scf.if %11 {
      %c0_10 = arith.constant 0 : index
      %c0_11 = arith.constant 0 : index
      %12 = vector.load %arg7[%c0_10, %c0_11] : memref<40x512xf32, #tpu.memory_space<vmem>>, vector<40x512xf32>
      %c0_12 = arith.constant 0 : index
      %c0_13 = arith.constant 0 : index
      %13 = vector.load %arg5[%c0_12, %c0_13] : memref<1x512xf32, #tpu.memory_space<vmem>>, vector<1x512xf32>
      %14 = vector.broadcast %13 : vector<1x512xf32> to vector<40x512xf32>
      %15 = arith.addf %12, %14 : vector<40x512xf32>
      %c0_14 = arith.constant 0 : index
      %c0_15 = arith.constant 0 : index
      %16 = vector.load %arg6[%c0_14, %c0_15] : memref<40x512xf32, #tpu.memory_space<vmem>>, vector<40x512xf32>
      tpu.vector_store %arg6[%c0_14, %c0_15], %15 {strides = array<i32>} : memref<40x512xf32, #tpu.memory_space<vmem>>, vector<40x512xf32>,
    } else {
    }
    return
  }
  func.func @transform_0(%arg0: i32, %arg1: i32, %arg2: i32) -> (i32, i32) {
    %c0_i32 = arith.constant 0 : i32
    return %arg0, %arg2 : i32, i32
  }
  func.func @transform_1(%arg0: i32, %arg1: i32, %arg2: i32) -> (i32, i32) {
    %c0_i32 = arith.constant 0 : i32
    return %arg2, %arg1 : i32, i32
  }
  func.func @transform_2(%arg0: i32, %arg1: i32, %arg2: i32) -> (i32, i32) {
    %c0_i32 = arith.constant 0 : i32
    %c0_i32_0 = arith.constant 0 : i32
    return %c0_i32, %arg1 : i32, i32
  }
  func.func @transform_3(%arg0: i32, %arg1: i32, %arg2: i32) -> (i32, i32) {
    %c0_i32 = arith.constant 0 : i32
    return %arg0, %arg1 : i32, i32
  }
}

</mosaic_0001>

<llo_original>
// kernel: tpu_custom_call.1
$region0: #{tpu_custom_call.1}
  #allocation0 [shape = 'u32[]', space=smem, size = 0x4, offset = 0x4, fixed_abs, tag = 'smem constant byte address 0x4 - core index']
  #allocation1 [shape = 'u32[144,128]{1,0:T(1,128)}', space=vmem, size = 0x12000, scoped, tag = 'internal scratch']
  #allocation2 [shape = 'f32[40,512]{1,0:T(8,128)}', space=vmem, size = 0x14000, scoped, tag = 'scratch operand']
  %s0 = inlined_call_operand.hbm [shape: f32[40,512], index: 0, kind: input, shape index: {}]
  %s1 = inlined_call_operand.hbm [shape: f32[512,512], index: 1, kind: input, shape index: {}]
  %s2 = inlined_call_operand.vmem [shape: f32[1,512], index: 2, kind: input, shape index: {}]
  %s3 = inlined_call_operand.hbm [shape: f32[40,512], index: 3, kind: output, shape index: {}]
  %s4 = sld [smem:[#allocation0]]
  $region38: #{tpu_custom_call.1} parent=0
    _
  %s6 = ssub.s32 1, %s4
  %s7 = scalar_select 0, %s6, %s4
  $region1: #{tpu_custom_call.1} parent=0
    #allocation3 [shape = 'u8[81920]{0}', space=vmem, size = 0x14000, scoped, tag = 'input window, operand 0, single buffered']
    #allocation4 [shape = 's32[1]{0}', space=sflag, size = 0x4, scoped, tag = 'scoped memory for tpu_custom_call.1']
    #allocation5 [shape = 's32[1]{0}', space=sflag, size = 0x4, scoped, tag = 'scoped memory for tpu_custom_call.1']
    #allocation6 [shape = 'u8[1048576]{0}', space=vmem, size = 0x100000, scoped, tag = 'input window, operand 1, single buffered']
    #allocation7 [shape = 's32[1]{0}', space=sflag, size = 0x4, scoped, tag = 'scoped memory for tpu_custom_call.1']
    #allocation8 [shape = 'u8[81920]{0}', space=vmem, size = 0x14000, scoped, tag = 'output window, operand 0, single buffered']
    %8 = vsyncpa [#allocation4], 0
    %9 = vsyncpa [#allocation7], 0
    %10 = vsyncpa [#allocation5], 0
    // Predicated region
    $region2: #{tpu_custom_call.1} parent=1 // pred_check
      _
    $region3: #{tpu_custom_call.1} parent=1 // pred_check_branch
      %12 = sbr.rel (0) target = $region5
    $region4: #{tpu_custom_call.1} parent=1 // pred_region
      %s14 = ssub.s32 2560, 2560
      %15 = vsyncadd [#allocation4], %s14
      %s16 = sshll.u32 [#allocation3], 4
      %s17 = int_to_ptr.vmem [resolvable:$true] %s16
      %22 = dma.hbm_to_vmem [thread:$0]  %s0, 2560, %s17, [#allocation4], 512, 512, 32
    $region5: #{tpu_custom_call.1} parent=1 // pred_fallthru
      _
    // Predicated region
    $region6: #{tpu_custom_call.1} parent=1 // pred_check
      _
    $region7: #{tpu_custom_call.1} parent=1 // pred_check_branch
      %24 = sbr.rel (0) target = $region9
    $region8: #{tpu_custom_call.1} parent=1 // pred_region
      %s26 = ssub.s32 32768, 32768
      %27 = vsyncadd [#allocation7], %s26
      %s28 = sshll.u32 [#allocation6], 4
      %s29 = int_to_ptr.vmem [resolvable:$true] %s28
      %34 = dma.hbm_to_vmem [thread:$0]  %s1, 32768, %s29, [#allocation7], 512, 512, 32
    $region9: #{tpu_custom_call.1} parent=1 // pred_fallthru
      _
    // Predicated region
    $region10: #{tpu_custom_call.1} parent=1 // pred_check
      _
    $region11: #{tpu_custom_call.1} parent=1 // pred_check_branch
      %36 = sbr.rel (0) target = $region13
    $region12: #{tpu_custom_call.1} parent=1 // pred_region
      _
    $region13: #{tpu_custom_call.1} parent=1 // pred_fallthru
      _
    // Predicated region
    $region14: #{tpu_custom_call.1} parent=1 // pred_check
      _
    $region15: #{tpu_custom_call.1} parent=1 // pred_check_branch
      %38 = sbr.rel (0) target = $region17
    $region16: #{tpu_custom_call.1} parent=1 // pred_region
      %39 = dma.done [#allocation4], 2560
    $region17: #{tpu_custom_call.1} parent=1 // pred_fallthru
      _
    // Predicated region
    $region18: #{tpu_custom_call.1} parent=1 // pred_check
      _
    $region19: #{tpu_custom_call.1} parent=1 // pred_check_branch
      %41 = sbr.rel (0) target = $region21
    $region20: #{tpu_custom_call.1} parent=1 // pred_region
      %42 = dma.done [#allocation7], 32768
    $region21: #{tpu_custom_call.1} parent=1 // pred_fallthru
      _
    %p43 = scmp.eq.s32.totalorder 0, 0
    // Predicated region
    $region22: #{tpu_custom_call.1} parent=1 // pred_check
      %p44 = pneg %p43
    $region23: #{tpu_custom_call.1} parent=1 // pred_check_branch
      %46 = sbr.rel (%p44) target = $region25
    $region24: #{tpu_custom_call.1} parent=1 // pred_region
      %47 = vst [vmem:[#allocation2] sm:$0xff] 0.0
      %48 = vst [vmem:[#allocation2 + $0x8] sm:$0xff] 0.0
      %49 = vst [vmem:[#allocation2 + $0x10] sm:$0xff] 0.0
      %50 = vst [vmem:[#allocation2 + $0x18] sm:$0xff] 0.0
      %51 = vst [vmem:[#allocation2 + $0x20] sm:$0xff] 0.0
      %52 = vst [vmem:[#allocation2 + $0x28] sm:$0xff] 0.0
      %53 = vst [vmem:[#allocation2 + $0x30] sm:$0xff] 0.0
      %54 = vst [vmem:[#allocation2 + $0x38] sm:$0xff] 0.0
      %55 = vst [vmem:[#allocation2 + $0x40] sm:$0xff] 0.0
      %56 = vst [vmem:[#allocation2 + $0x48] sm:$0xff] 0.0
      %57 = vst [vmem:[#allocation2 + $0x50] sm:$0xff] 0.0
      %58 = vst [vmem:[#allocation2 + $0x58] sm:$0xff] 0.0
      %59 = vst [vmem:[#allocation2 + $0x60] sm:$0xff] 0.0
      %60 = vst [vmem:[#allocation2 + $0x68] sm:$0xff] 0.0
      %61 = vst [vmem:[#allocation2 + $0x70] sm:$0xff] 0.0
      %62 = vst [vmem:[#allocation2 + $0x78] sm:$0xff] 0.0
      %63 = vst [vmem:[#allocation2 + $0x80] sm:$0xff] 0.0
      %64 = vst [vmem:[#allocation2 + $0x88] sm:$0xff] 0.0
      %65 = vst [vmem:[#allocation2 + $0x90] sm:$0xff] 0.0
      %66 = vst [vmem:[#allocation2 + $0x98] sm:$0xff] 0.0
    $region25: #{tpu_custom_call.1} parent=1 // pred_fallthru
      _
    %v67 = vld [vmem:[#allocation2] sm:$0xff]
    %v68 = vld [vmem:[#allocation2 + $0x8] sm:$0xff]
    %v69 = vld [vmem:[#allocation2 + $0x10] sm:$0xff]
    %v70 = vld [vmem:[#allocation2 + $0x18] sm:$0xff]
    %v71 = vld [vmem:[#allocation2 + $0x20] sm:$0xff]
    %v72 = vld [vmem:[#allocation2 + $0x28] sm:$0xff]
    %v73 = vld [vmem:[#allocation2 + $0x30] sm:$0xff]
    %v74 = vld [vmem:[#allocation2 + $0x38] sm:$0xff]
    %v75 = vld [vmem:[#allocation2 + $0x40] sm:$0xff]
    %v76 = vld [vmem:[#allocation2 + $0x48] sm:$0xff]
    %v77 = vld [vmem:[#allocation2 + $0x50] sm:$0xff]
    %v78 = vld [vmem:[#allocation2 + $0x58] sm:$0xff]
    %v79 = vld [vmem:[#allocation2 + $0x60] sm:$0xff]
    %v80 = vld [vmem:[#allocation2 + $0x68] sm:$0xff]
    %v81 = vld [vmem:[#allocation2 + $0x70] sm:$0xff]
    %v82 = vld [vmem:[#allocation2 + $0x78] sm:$0xff]
    %v83 = vld [vmem:[#allocation2 + $0x80] sm:$0xff]
    %v84 = vld [vmem:[#allocation2 + $0x88] sm:$0xff]
    %v85 = vld [vmem:[#allocation2 + $0x90] sm:$0xff]
    %v86 = vld [vmem:[#allocation2 + $0x98] sm:$0xff]
    %v87 = vld [vmem:[#allocation3] sm:$0xff]
    %v88 = vld [vmem:[#allocation3 + $0x8] sm:$0xff]
    %v89 = vld [vmem:[#allocation3 + $0x10] sm:$0xff]
    %v90 = vld [vmem:[#allocation3 + $0x18] sm:$0xff]
    %v91 = vld [vmem:[#allocation3 + $0x20] sm:$0xff]
    %v92 = vld [vmem:[#allocation3 + $0x28] sm:$0xff]
    %v93 = vld [vmem:[#allocation3 + $0x30] sm:$0xff]
    %v94 = vld [vmem:[#allocation3 + $0x38] sm:$0xff]
    %v95 = vld [vmem:[#allocation3 + $0x40] sm:$0xff]
    %v96 = vld [vmem:[#allocation3 + $0x48] sm:$0xff]
    %v97 = vld [vmem:[#allocation3 + $0x50] sm:$0xff]
    %v98 = vld [vmem:[#allocation3 + $0x58] sm:$0xff]
    %v99 = vld [vmem:[#allocation3 + $0x60] sm:$0xff]
    %v100 = vld [vmem:[#allocation3 + $0x68] sm:$0xff]
    %v101 = vld [vmem:[#allocation3 + $0x70] sm:$0xff]
    %v102 = vld [vmem:[#allocation3 + $0x78] sm:$0xff]
    %v103 = vld [vmem:[#allocation3 + $0x80] sm:$0xff]
    %v104 = vld [vmem:[#allocation3 + $0x88] sm:$0xff]
    %v105 = vld [vmem:[#allocation3 + $0x90] sm:$0xff]
    %v106 = vld [vmem:[#allocation3 + $0x98] sm:$0xff]
    %v107 = vld [vmem:[#allocation6] sm:$0xff]
    %v108 = vld [vmem:[#allocation6 + $0x8] sm:$0xff]
    %v109 = vld [vmem:[#allocation6 + $0x10] sm:$0xff]
    %v110 = vld [vmem:[#allocation6 + $0x18] sm:$0xff]
    %v111 = vld [vmem:[#allocation6 + $0x20] sm:$0xff]
    %v112 = vld [vmem:[#allocation6 + $0x28] sm:$0xff]
    %v113 = vld [vmem:[#allocation6 + $0x30] sm:$0xff]
    %v114 = vld [vmem:[#allocation6 + $0x38] sm:$0xff]
    %v115 = vld [vmem:[#allocation6 + $0x40] sm:$0xff]
    %v116 = vld [vmem:[#allocation6 + $0x48] sm:$0xff]
    %v117 = vld [vmem:[#allocation6 + $0x50] sm:$0xff]
    %v118 = vld [vmem:[#allocation6 + $0x58] sm:$0xff]
    %v119 = vld [vmem:[#allocation6 + $0x60] sm:$0xff]
    %v120 = vld [vmem:[#allocation6 + $0x68] sm:$0xff]
    %v121 = vld [vmem:[#allocation6 + $0x70] sm:$0xff]
    %v122 = vld [vmem:[#allocation6 + $0x78] sm:$0xff]
    %v123 = vld [vmem:[#allocation6 + $0x80] sm:$0xff]
    %v124 = vld [vmem:[#allocation6 + $0x88] sm:$0xff]
    %v125 = vld [vmem:[#allocation6 + $0x90] sm:$0xff]
    %v126 = vld [vmem:[#allocation6 + $0x98] sm:$0xff]
    %v127 = vld [vmem:[#allocation6 + $0xa0] sm:$0xff]
    %v128 = vld [vmem:[#allocation6 + $0xa8] sm:$0xff]
    %v129 = vld [vmem:[#allocation6 + $0xb0] sm:$0xff]
    %v130 = vld [vmem:[#allocation6 + $0xb8] sm:$0xff]
    %v131 = vld [vmem:[#allocation6 + $0xc0] sm:$0xff]
    %v132 = vld [vmem:[#allocation6 + $0xc8] sm:$0xff]
    %v133 = vld [vmem:[#allocation6 + $0xd0] sm:$0xff]
    %v134 = vld [vmem:[#allocation6 + $0xd8] sm:$0xff]
    %v135 = vld [vmem:[#allocation6 + $0xe0] sm:$0xff]
    %v136 = vld [vmem:[#allocation6 + $0xe8] sm:$0xff]
    %v137 = vld [vmem:[#allocation6 + $0xf0] sm:$0xff]
    %v138 = vld [vmem:[#allocation6 + $0xf8] sm:$0xff]
    %v139 = vld [vmem:[#allocation6 + $0x100] sm:$0xff]
    %v140 = vld [vmem:[#allocation6 + $0x108] sm:$0xff]
    %v141 = vld [vmem:[#allocation6 + $0x110] sm:$0xff]
    %v142 = vld [vmem:[#allocation6 + $0x118] sm:$0xff]
    %v143 = vld [vmem:[#allocation6 + $0x120] sm:$0xff]
    %v144 = vld [vmem:[#allocation6 + $0x128] sm:$0xff]
    %v145 = vld [vmem:[#allocation6 + $0x130] sm:$0xff]
    %v146 = vld [vmem:[#allocation6 + $0x138] sm:$0xff]
    %v147 = vld [vmem:[#allocation6 + $0x140] sm:$0xff]
    %v148 = vld [vmem:[#allocation6 + $0x148] sm:$0xff]
    %v149 = vld [vmem:[#allocation6 + $0x150] sm:$0xff]
    %v150 = vld [vmem:[#allocation6 + $0x158] sm:$0xff]
    %v151 = vld [vmem:[#allocation6 + $0x160] sm:$0xff]
    %v152 = vld [vmem:[#allocation6 + $0x168] sm:$0xff]
    %v153 = vld [vmem:[#allocation6 + $0x170] sm:$0xff]
    %v154 = vld [vmem:[#allocation6 + $0x178] sm:$0xff]
    %v155 = vld [vmem:[#allocation6 + $0x180] sm:$0xff]
    %v156 = vld [vmem:[#allocation6 + $0x188] sm:$0xff]
    %v157 = vld [vmem:[#allocation6 + $0x190] sm:$0xff]
    %v158 = vld [vmem:[#allocation6 + $0x198] sm:$0xff]
    %v159 = vld [vmem:[#allocation6 + $0x1a0] sm:$0xff]
    %v160 = vld [vmem:[#allocation6 + $0x1a8] sm:$0xff]
    %v161 = vld [vmem:[#allocation6 + $0x1b0] sm:$0xff]
    %v162 = vld [vmem:[#allocation6 + $0x1b8] sm:$0xff]
    %v163 = vld [vmem:[#allocation6 + $0x1c0] sm:$0xff]
    %v164 = vld [vmem:[#allocation6 + $0x1c8] sm:$0xff]
    %v165 = vld [vmem:[#allocation6 + $0x1d0] sm:$0xff]
    %v166 = vld [vmem:[#allocation6 + $0x1d8] sm:$0xff]
    %v167 = vld [vmem:[#allocation6 + $0x1e0] sm:$0xff]
    %v168 = vld [vmem:[#allocation6 + $0x1e8] sm:$0xff]
    %v169 = vld [vmem:[#allocation6 + $0x1f0] sm:$0xff]
    %v170 = vld [vmem:[#allocation6 + $0x1f8] sm:$0xff]
    %v171 = vld [vmem:[#allocation6 + $0x200] sm:$0xff]
    %v172 = vld [vmem:[#allocation6 + $0x208] sm:$0xff]
    %v173 = vld [vmem:[#allocation6 + $0x210] sm:$0xff]
    %v174 = vld [vmem:[#allocation6 + $0x218] sm:$0xff]
    %v175 = vld [vmem:[#allocation6 + $0x220] sm:$0xff]
    %v176 = vld [vmem:[#allocation6 + $0x228] sm:$0xff]
    %v177 = vld [vmem:[#allocation6 + $0x230] sm:$0xff]
    %v178 = vld [vmem:[#allocation6 + $0x238] sm:$0xff]
    %v179 = vld [vmem:[#allocation6 + $0x240] sm:$0xff]
    %v180 = vld [vmem:[#allocation6 + $0x248] sm:$0xff]
    %v181 = vld [vmem:[#allocation6 + $0x250] sm:$0xff]
    %v182 = vld [vmem:[#allocation6 + $0x258] sm:$0xff]
    %v183 = vld [vmem:[#allocation6 + $0x260] sm:$0xff]
    %v184 = vld [vmem:[#allocation6 + $0x268] sm:$0xff]
    %v185 = vld [vmem:[#allocation6 + $0x270] sm:$0xff]
    %v186 = vld [vmem:[#allocation6 + $0x278] sm:$0xff]
    %v187 = vld [vmem:[#allocation6 + $0x280] sm:$0xff]
    %v188 = vld [vmem:[#allocation6 + $0x288] sm:$0xff]
    %v189 = vld [vmem:[#allocation6 + $0x290] sm:$0xff]
    %v190 = vld [vmem:[#allocation6 + $0x298] sm:$0xff]
    %v191 = vld [vmem:[#allocation6 + $0x2a0] sm:$0xff]
    %v192 = vld [vmem:[#allocation6 + $0x2a8] sm:$0xff]
    %v193 = vld [vmem:[#allocation6 + $0x2b0] sm:$0xff]
    %v194 = vld [vmem:[#allocation6 + $0x2b8] sm:$0xff]
    %v195 = vld [vmem:[#allocation6 + $0x2c0] sm:$0xff]
    %v196 = vld [vmem:[#allocation6 + $0x2c8] sm:$0xff]
    %v197 = vld [vmem:[#allocation6 + $0x2d0] sm:$0xff]
    %v198 = vld [vmem:[#allocation6 + $0x2d8] sm:$0xff]
    %v199 = vld [vmem:[#allocation6 + $0x2e0] sm:$0xff]
    %v200 = vld [vmem:[#allocation6 + $0x2e8] sm:$0xff]
    %v201 = vld [vmem:[#allocation6 + $0x2f0] sm:$0xff]
    %v202 = vld [vmem:[#allocation6 + $0x2f8] sm:$0xff]
    %v203 = vld [vmem:[#allocation6 + $0x300] sm:$0xff]
    %v204 = vld [vmem:[#allocation6 + $0x308] sm:$0xff]
    %v205 = vld [vmem:[#allocation6 + $0x310] sm:$0xff]
    %v206 = vld [vmem:[#allocation6 + $0x318] sm:$0xff]
    %v207 = vld [vmem:[#allocation6 + $0x320] sm:$0xff]
    %v208 = vld [vmem:[#allocation6 + $0x328] sm:$0xff]
    %v209 = vld [vmem:[#allocation6 + $0x330] sm:$0xff]
    %v210 = vld [vmem:[#allocation6 + $0x338] sm:$0xff]
    %v211 = vld [vmem:[#allocation6 + $0x340] sm:$0xff]
    %v212 = vld [vmem:[#allocation6 + $0x348] sm:$0xff]
    %v213 = vld [vmem:[#allocation6 + $0x350] sm:$0xff]
    %v214 = vld [vmem:[#allocation6 + $0x358] sm:$0xff]
    %v215 = vld [vmem:[#allocation6 + $0x360] sm:$0xff]
    %v216 = vld [vmem:[#allocation6 + $0x368] sm:$0xff]
    %v217 = vld [vmem:[#allocation6 + $0x370] sm:$0xff]
    %v218 = vld [vmem:[#allocation6 + $0x378] sm:$0xff]
    %v219 = vld [vmem:[#allocation6 + $0x380] sm:$0xff]
    %v220 = vld [vmem:[#allocation6 + $0x388] sm:$0xff]
    %v221 = vld [vmem:[#allocation6 + $0x390] sm:$0xff]
    %v222 = vld [vmem:[#allocation6 + $0x398] sm:$0xff]
    %v223 = vld [vmem:[#allocation6 + $0x3a0] sm:$0xff]
    %v224 = vld [vmem:[#allocation6 + $0x3a8] sm:$0xff]
    %v225 = vld [vmem:[#allocation6 + $0x3b0] sm:$0xff]
    %v226 = vld [vmem:[#allocation6 + $0x3b8] sm:$0xff]
    %v227 = vld [vmem:[#allocation6 + $0x3c0] sm:$0xff]
    %v228 = vld [vmem:[#allocation6 + $0x3c8] sm:$0xff]
    %v229 = vld [vmem:[#allocation6 + $0x3d0] sm:$0xff]
    %v230 = vld [vmem:[#allocation6 + $0x3d8] sm:$0xff]
    %v231 = vld [vmem:[#allocation6 + $0x3e0] sm:$0xff]
    %v232 = vld [vmem:[#allocation6 + $0x3e8] sm:$0xff]
    %v233 = vld [vmem:[#allocation6 + $0x3f0] sm:$0xff]
    %v234 = vld [vmem:[#allocation6 + $0x3f8] sm:$0xff]
    %v235 = vld [vmem:[#allocation6 + $0x400] sm:$0xff]
    %v236 = vld [vmem:[#allocation6 + $0x408] sm:$0xff]
    %v237 = vld [vmem:[#allocation6 + $0x410] sm:$0xff]
    %v238 = vld [vmem:[#allocation6 + $0x418] sm:$0xff]
    %v239 = vld [vmem:[#allocation6 + $0x420] sm:$0xff]
    %v240 = vld [vmem:[#allocation6 + $0x428] sm:$0xff]
    %v241 = vld [vmem:[#allocation6 + $0x430] sm:$0xff]
    %v242 = vld [vmem:[#allocation6 + $0x438] sm:$0xff]
    %v243 = vld [vmem:[#allocation6 + $0x440] sm:$0xff]
    %v244 = vld [vmem:[#allocation6 + $0x448] sm:$0xff]
    %v245 = vld [vmem:[#allocation6 + $0x450] sm:$0xff]
    %v246 = vld [vmem:[#allocation6 + $0x458] sm:$0xff]
    %v247 = vld [vmem:[#allocation6 + $0x460] sm:$0xff]
    %v248 = vld [vmem:[#allocation6 + $0x468] sm:$0xff]
    %v249 = vld [vmem:[#allocation6 + $0x470] sm:$0xff]
    %v250 = vld [vmem:[#allocation6 + $0x478] sm:$0xff]
    %v251 = vld [vmem:[#allocation6 + $0x480] sm:$0xff]
    %v252 = vld [vmem:[#allocation6 + $0x488] sm:$0xff]
    %v253 = vld [vmem:[#allocation6 + $0x490] sm:$0xff]
    %v254 = vld [vmem:[#allocation6 + $0x498] sm:$0xff]
    %v255 = vld [vmem:[#allocation6 + $0x4a0] sm:$0xff]
    %v256 = vld [vmem:[#allocation6 + $0x4a8] sm:$0xff]
    %v257 = vld [vmem:[#allocation6 + $0x4b0] sm:$0xff]
    %v258 = vld [vmem:[#allocation6 + $0x4b8] sm:$0xff]
    %v259 = vld [vmem:[#allocation6 + $0x4c0] sm:$0xff]
    %v260 = vld [vmem:[#allocation6 + $0x4c8] sm:$0xff]
    %v261 = vld [vmem:[#allocation6 + $0x4d0] sm:$0xff]
    %v262 = vld [vmem:[#allocation6 + $0x4d8] sm:$0xff]
    %v263 = vld [vmem:[#allocation6 + $0x4e0] sm:$0xff]
    %v264 = vld [vmem:[#allocation6 + $0x4e8] sm:$0xff]
    %v265 = vld [vmem:[#allocation6 + $0x4f0] sm:$0xff]
    %v266 = vld [vmem:[#allocation6 + $0x4f8] sm:$0xff]
    %v267 = vld [vmem:[#allocation6 + $0x500] sm:$0xff]
    %v268 = vld [vmem:[#allocation6 + $0x508] sm:$0xff]
    %v269 = vld [vmem:[#allocation6 + $0x510] sm:$0xff]
    %v270 = vld [vmem:[#allocation6 + $0x518] sm:$0xff]
    %v271 = vld [vmem:[#allocation6 + $0x520] sm:$0xff]
    %v272 = vld [vmem:[#allocation6 + $0x528] sm:$0xff]
    %v273 = vld [vmem:[#allocation6 + $0x530] sm:$0xff]
    %v274 = vld [vmem:[#allocation6 + $0x538] sm:$0xff]
    %v275 = vld [vmem:[#allocation6 + $0x540] sm:$0xff]
    %v276 = vld [vmem:[#allocation6 + $0x548] sm:$0xff]
    %v277 = vld [vmem:[#allocation6 + $0x550] sm:$0xff]
    %v278 = vld [vmem:[#allocation6 + $0x558] sm:$0xff]
    %v279 = vld [vmem:[#allocation6 + $0x560] sm:$0xff]
    %v280 = vld [vmem:[#allocation6 + $0x568] sm:$0xff]
    %v281 = vld [vmem:[#allocation6 + $0x570] sm:$0xff]
    %v282 = vld [vmem:[#allocation6 + $0x578] sm:$0xff]
    %v283 = vld [vmem:[#allocation6 + $0x580] sm:$0xff]
    %v284 = vld [vmem:[#allocation6 + $0x588] sm:$0xff]
    %v285 = vld [vmem:[#allocation6 + $0x590] sm:$0xff]
    %v286 = vld [vmem:[#allocation6 + $0x598] sm:$0xff]
    %v287 = vld [vmem:[#allocation6 + $0x5a0] sm:$0xff]
    %v288 = vld [vmem:[#allocation6 + $0x5a8] sm:$0xff]
    %v289 = vld [vmem:[#allocation6 + $0x5b0] sm:$0xff]
    %v290 = vld [vmem:[#allocation6 + $0x5b8] sm:$0xff]
    %v291 = vld [vmem:[#allocation6 + $0x5c0] sm:$0xff]
    %v292 = vld [vmem:[#allocation6 + $0x5c8] sm:$0xff]
    %v293 = vld [vmem:[#allocation6 + $0x5d0] sm:$0xff]
    %v294 = vld [vmem:[#allocation6 + $0x5d8] sm:$0xff]
    %v295 = vld [vmem:[#allocation6 + $0x5e0] sm:$0xff]
    %v296 = vld [vmem:[#allocation6 + $0x5e8] sm:$0xff]
    %v297 = vld [vmem:[#allocation6 + $0x5f0] sm:$0xff]
    %v298 = vld [vmem:[#allocation6 + $0x5f8] sm:$0xff]
    %v299 = vld [vmem:[#allocation6 + $0x600] sm:$0xff]
    %v300 = vld [vmem:[#allocation6 + $0x608] sm:$0xff]
    %v301 = vld [vmem:[#allocation6 + $0x610] sm:$0xff]
    %v302 = vld [vmem:[#allocation6 + $0x618] sm:$0xff]
    %v303 = vld [vmem:[#allocation6 + $0x620] sm:$0xff]
    %v304 = vld [vmem:[#allocation6 + $0x628] sm:$0xff]
    %v305 = vld [vmem:[#allocation6 + $0x630] sm:$0xff]
    %v306 = vld [vmem:[#allocation6 + $0x638] sm:$0xff]
    %v307 = vld [vmem:[#allocation6 + $0x640] sm:$0xff]
    %v308 = vld [vmem:[#allocation6 + $0x648] sm:$0xff]
    %v309 = vld [vmem:[#allocation6 + $0x650] sm:$0xff]
    %v310 = vld [vmem:[#allocation6 + $0x658] sm:$0xff]
    %v311 = vld [vmem:[#allocation6 + $0x660] sm:$0xff]
    %v312 = vld [vmem:[#allocation6 + $0x668] sm:$0xff]
    %v313 = vld [vmem:[#allocation6 + $0x670] sm:$0xff]
    %v314 = vld [vmem:[#allocation6 + $0x678] sm:$0xff]
    %v315 = vld [vmem:[#allocation6 + $0x680] sm:$0xff]
    %v316 = vld [vmem:[#allocation6 + $0x688] sm:$0xff]
    %v317 = vld [vmem:[#allocation6 + $0x690] sm:$0xff]
    %v318 = vld [vmem:[#allocation6 + $0x698] sm:$0xff]
    %v319 = vld [vmem:[#allocation6 + $0x6a0] sm:$0xff]
    %v320 = vld [vmem:[#allocation6 + $0x6a8] sm:$0xff]
    %v321 = vld [vmem:[#allocation6 + $0x6b0] sm:$0xff]
    %v322 = vld [vmem:[#allocation6 + $0x6b8] sm:$0xff]
    %v323 = vld [vmem:[#allocation6 + $0x6c0] sm:$0xff]
    %v324 = vld [vmem:[#allocation6 + $0x6c8] sm:$0xff]
    %v325 = vld [vmem:[#allocation6 + $0x6d0] sm:$0xff]
    %v326 = vld [vmem:[#allocation6 + $0x6d8] sm:$0xff]
    %v327 = vld [vmem:[#allocation6 + $0x6e0] sm:$0xff]
    %v328 = vld [vmem:[#allocation6 + $0x6e8] sm:$0xff]
    %v329 = vld [vmem:[#allocation6 + $0x6f0] sm:$0xff]
    %v330 = vld [vmem:[#allocation6 + $0x6f8] sm:$0xff]
    %v331 = vld [vmem:[#allocation6 + $0x700] sm:$0xff]
    %v332 = vld [vmem:[#allocation6 + $0x708] sm:$0xff]
    %v333 = vld [vmem:[#allocation6 + $0x710] sm:$0xff]
    %v334 = vld [vmem:[#allocation6 + $0x718] sm:$0xff]
    %v335 = vld [vmem:[#allocation6 + $0x720] sm:$0xff]
    %v336 = vld [vmem:[#allocation6 + $0x728] sm:$0xff]
    %v337 = vld [vmem:[#allocation6 + $0x730] sm:$0xff]
    %v338 = vld [vmem:[#allocation6 + $0x738] sm:$0xff]
    %v339 = vld [vmem:[#allocation6 + $0x740] sm:$0xff]
    %v340 = vld [vmem:[#allocation6 + $0x748] sm:$0xff]
    %v341 = vld [vmem:[#allocation6 + $0x750] sm:$0xff]
    %v342 = vld [vmem:[#allocation6 + $0x758] sm:$0xff]
    %v343 = vld [vmem:[#allocation6 + $0x760] sm:$0xff]
    %v344 = vld [vmem:[#allocation6 + $0x768] sm:$0xff]
    %v345 = vld [vmem:[#allocation6 + $0x770] sm:$0xff]
    %v346 = vld [vmem:[#allocation6 + $0x778] sm:$0xff]
    %v347 = vld [vmem:[#allocation6 + $0x780] sm:$0xff]
    %v348 = vld [vmem:[#allocation6 + $0x788] sm:$0xff]
    %v349 = vld [vmem:[#allocation6 + $0x790] sm:$0xff]
    %v350 = vld [vmem:[#allocation6 + $0x798] sm:$0xff]
    %v351 = vld [vmem:[#allocation6 + $0x7a0] sm:$0xff]
    %v352 = vld [vmem:[#allocation6 + $0x7a8] sm:$0xff]
    %v353 = vld [vmem:[#allocation6 + $0x7b0] sm:$0xff]
    %v354 = vld [vmem:[#allocation6 + $0x7b8] sm:$0xff]
    %v355 = vld [vmem:[#allocation6 + $0x7c0] sm:$0xff]
    %v356 = vld [vmem:[#allocation6 + $0x7c8] sm:$0xff]
    %v357 = vld [vmem:[#allocation6 + $0x7d0] sm:$0xff]
    %v358 = vld [vmem:[#allocation6 + $0x7d8] sm:$0xff]
    %v359 = vld [vmem:[#allocation6 + $0x7e0] sm:$0xff]
    %v360 = vld [vmem:[#allocation6 + $0x7e8] sm:$0xff]
    %v361 = vld [vmem:[#allocation6 + $0x7f0] sm:$0xff]
    %v362 = vld [vmem:[#allocation6 + $0x7f8] sm:$0xff]
    %363 = vmatprep.subr.mxu0 %v108
    %364 = vmatpush1.msra.mxu0 %v107
    %365 = vmatprep.subr.mxu0 %v112
    %366 = vmatpush1.msra.mxu0 %v111
    %367 = vmatprep.subr.mxu0 %v116
    %368 = vmatpush1.msra.mxu0 %v115
    %369 = vmatprep.subr.mxu0 %v120
    %370 = vmatpush1.msra.mxu0 %v119
    %371 = vmatprep.subr.mxu0 %v124
    %372 = vmatpush1.msra.mxu0 %v123
    %373 = vmatprep.subr.mxu0 %v128
    %374 = vmatpush1.msra.mxu0 %v127
    %375 = vmatprep.subr.mxu0 %v132
    %376 = vmatpush1.msra.mxu0 %v131
    %377 = vmatprep.subr.mxu0 %v136
    %378 = vmatpush1.msra.mxu0 %v135
    %379 = vmatprep.subr.mxu0 %v140
    %380 = vmatpush1.msra.mxu0 %v139
    %381 = vmatprep.subr.mxu0 %v144
    %382 = vmatpush1.msra.mxu0 %v143
    %383 = vmatprep.subr.mxu0 %v148
    %384 = vmatpush1.msra.mxu0 %v147
    %385 = vmatprep.subr.mxu0 %v152
    %386 = vmatpush1.msra.mxu0 %v151
    %387 = vmatprep.subr.mxu0 %v156
    %388 = vmatpush1.msra.mxu0 %v155
    %389 = vmatprep.subr.mxu0 %v160
    %390 = vmatpush1.msra.mxu0 %v159
    %391 = vmatprep.subr.mxu0 %v164
    %392 = vmatpush1.msra.mxu0 %v163
    %393 = vmatprep.subr.mxu0 %v168
    %394 = vmatpush1.msra.mxu0 %v167
    %395 = vmatprep.subr.mxu0 %v172
    %396 = vmatpush1.msra.mxu0 %v171
    %397 = vmatprep.subr.mxu0 %v176
    %398 = vmatpush1.msra.mxu0 %v175
    %399 = vmatprep.subr.mxu0 %v180
    %400 = vmatpush1.msra.mxu0 %v179
    %401 = vmatprep.subr.mxu0 %v184
    %402 = vmatpush1.msra.mxu0 %v183
    %403 = vmatprep.subr.mxu0 %v188
    %404 = vmatpush1.msra.mxu0 %v187
    %405 = vmatprep.subr.mxu0 %v192
    %406 = vmatpush1.msra.mxu0 %v191
    %407 = vmatprep.subr.mxu0 %v196
    %408 = vmatpush1.msra.mxu0 %v195
    %409 = vmatprep.subr.mxu0 %v200
    %410 = vmatpush1.msra.mxu0 %v199
    %411 = vmatprep.subr.mxu0 %v204
    %412 = vmatpush1.msra.mxu0 %v203
    %413 = vmatprep.subr.mxu0 %v208
    %414 = vmatpush1.msra.mxu0 %v207
    %415 = vmatprep.subr.mxu0 %v212
    %416 = vmatpush1.msra.mxu0 %v211
    %417 = vmatprep.subr.mxu0 %v216
    %418 = vmatpush1.msra.mxu0 %v215
    %419 = vmatprep.subr.mxu0 %v220
    %420 = vmatpush1.msra.mxu0 %v219
    %421 = vmatprep.subr.mxu0 %v224
    %422 = vmatpush1.msra.mxu0 %v223
    %423 = vmatprep.subr.mxu0 %v228
    %424 = vmatpush1.msra.mxu0 %v227
    %425 = vmatprep.subr.mxu0 %v232
    %426 = vmatpush1.msra.mxu0 %v231
    %427 = vmatprep.mubr.f32.mxu0 %v88
    %428 = vmatmul.mubr.f32.gmra.mrb[0].mxu0 %v87
    %v429 = vpop.f32.mrb[0].mxu0
    %v430 = vadd.f32 0.0, %v429
    %v431 = vpop.f32.mrb[0].mxu0
    %v432 = vadd.f32 0.0, %v431
    %433 = vmatprep.mubr.f32.mxu0 %v92
    %434 = vmatmul.mubr.f32.gmra.mrb[0].mxu0 %v91
    %v435 = vpop.f32.mrb[0].mxu0
    %v436 = vadd.f32 0.0, %v435
    %v437 = vpop.f32.mrb[0].mxu0
    %v438 = vadd.f32 0.0, %v437
    %439 = vmatprep.mubr.f32.mxu0 %v96
    %440 = vmatmul.mubr.f32.gmra.mrb[0].mxu0 %v95
    %v441 = vpop.f32.mrb[0].mxu0
    %v442 = vadd.f32 0.0, %v441
    %v443 = vpop.f32.mrb[0].mxu0
    %v444 = vadd.f32 0.0, %v443
    %445 = vmatprep.mubr.f32.mxu0 %v100
    %446 = vmatmul.mubr.f32.gmra.mrb[0].mxu0 %v99
    %v447 = vpop.f32.mrb[0].mxu0
    %v448 = vadd.f32 0.0, %v447
    %v449 = vpop.f32.mrb[0].mxu0
    %v450 = vadd.f32 0.0, %v449
    %451 = vmatprep.mubr.f32.mxu0 %v104
    %452 = vmatmul.mubr.f32.gmra.mrb[0].mxu0 %v103
    %v453 = vpop.f32.mrb[0].mxu0
    %v454 = vadd.f32 0.0, %v453
    %v455 = vpop.f32.mrb[0].mxu0
    %v456 = vadd.f32 0.0, %v455
    %457 = vdwg.mxu0
    %458 = vmatprep.subr.mxu0 %v236
    %459 = vmatpush1.msra.mxu0 %v235
    %460 = vmatprep.subr.mxu0 %v240
    %461 = vmatpush1.msra.mxu0 %v239
    %462 = vmatprep.subr.mxu0 %v244
    %463 = vmatpush1.msra.mxu0 %v243
    %464 = vmatprep.subr.mxu0 %v248
    %465 = vmatpush1.msra.mxu0 %v247
    %466 = vmatprep.subr.mxu0 %v252
    %467 = vmatpush1.msra.mxu0 %v251
    %468 = vmatprep.subr.mxu0 %v256
    %469 = vmatpush1.msra.mxu0 %v255
    %470 = vmatprep.subr.mxu0 %v260
    %471 = vmatpush1.msra.mxu0 %v259
    %472 = vmatprep.subr.mxu0 %v264
    %473 = vmatpush1.msra.mxu0 %v263
    %474 = vmatprep.subr.mxu0 %v268
    %475 = vmatpush1.msra.mxu0 %v267
    %476 = vmatprep.subr.mxu0 %v272
    %477 = vmatpush1.msra.mxu0 %v271
    %478 = vmatprep.subr.mxu0 %v276
    %479 = vmatpush1.msra.mxu0 %v275
    %480 = vmatprep.subr.mxu0 %v280
    %481 = vmatpush1.msra.mxu0 %v279
    %482 = vmatprep.subr.mxu0 %v284
    %483 = vmatpush1.msra.mxu0 %v283
    %484 = vmatprep.subr.mxu0 %v288
    %485 = vmatpush1.msra.mxu0 %v287
    %486 = vmatprep.subr.mxu0 %v292
    %487 = vmatpush1.msra.mxu0 %v291
    %488 = vmatprep.subr.mxu0 %v296
    %489 = vmatpush1.msra.mxu0 %v295
    %490 = vmatprep.subr.mxu0 %v300
    %491 = vmatpush1.msra.mxu0 %v299
    %492 = vmatprep.subr.mxu0 %v304
    %493 = vmatpush1.msra.mxu0 %v303
    %494 = vmatprep.subr.mxu0 %v308
    %495 = vmatpush1.msra.mxu0 %v307
    %496 = vmatprep.subr.mxu0 %v312
    %497 = vmatpush1.msra.mxu0 %v311
    %498 = vmatprep.subr.mxu0 %v316
    %499 = vmatpush1.msra.mxu0 %v315
    %500 = vmatprep.subr.mxu0 %v320
    %501 = vmatpush1.msra.mxu0 %v319
    %502 = vmatprep.subr.mxu0 %v324
    %503 = vmatpush1.msra.mxu0 %v323
    %504 = vmatprep.subr.mxu0 %v328
    %505 = vmatpush1.msra.mxu0 %v327
    %506 = vmatprep.subr.mxu0 %v332
    %507 = vmatpush1.msra.mxu0 %v331
    %508 = vmatprep.subr.mxu0 %v336
    %509 = vmatpush1.msra.mxu0 %v335
    %510 = vmatprep.subr.mxu0 %v340
    %511 = vmatpush1.msra.mxu0 %v339
    %512 = vmatprep.subr.mxu0 %v344
    %513 = vmatpush1.msra.mxu0 %v343
    %514 = vmatprep.subr.mxu0 %v348
    %515 = vmatpush1.msra.mxu0 %v347
    %516 = vmatprep.subr.mxu0 %v352
    %517 = vmatpush1.msra.mxu0 %v351
    %518 = vmatprep.subr.mxu0 %v356
    %519 = vmatpush1.msra.mxu0 %v355
    %520 = vmatprep.subr.mxu0 %v360
    %521 = vmatpush1.msra.mxu0 %v359
    %522 = vmatprep.mubr.f32.mxu0 %v90
    %523 = vmatmul.mubr.f32.gmra.mrb[0].mxu0 %v89
    %v524 = vpop.f32.mrb[0].mxu0
    %v525 = vadd.f32 %v430, %v524
    %v526 = vpop.f32.mrb[0].mxu0
    %v527 = vadd.f32 %v432, %v526
    %528 = vmatprep.mubr.f32.mxu0 %v94
    %529 = vmatmul.mubr.f32.gmra.mrb[0].mxu0 %v93
    %v530 = vpop.f32.mrb[0].mxu0
    %v531 = vadd.f32 %v436, %v530
    %v532 = vpop.f32.mrb[0].mxu0
    %v533 = vadd.f32 %v438, %v532
    %534 = vmatprep.mubr.f32.mxu0 %v98
    %535 = vmatmul.mubr.f32.gmra.mrb[0].mxu0 %v97
    %v536 = vpop.f32.mrb[0].mxu0
    %v537 = vadd.f32 %v442, %v536
    %v538 = vpop.f32.mrb[0].mxu0
    %v539 = vadd.f32 %v444, %v538
    %540 = vmatprep.mubr.f32.mxu0 %v102
    %541 = vmatmul.mubr.f32.gmra.mrb[0].mxu0 %v101
    %v542 = vpop.f32.mrb[0].mxu0
    %v543 = vadd.f32 %v448, %v542
    %v544 = vpop.f32.mrb[0].mxu0
    %v545 = vadd.f32 %v450, %v544
    %546 = vmatprep.mubr.f32.mxu0 %v106
    %547 = vmatmul.mubr.f32.gmra.mrb[0].mxu0 %v105
    %v548 = vpop.f32.mrb[0].mxu0
    %v549 = vadd.f32 %v454, %v548
    %v550 = vpop.f32.mrb[0].mxu0
    %v551 = vadd.f32 %v456, %v550
    %552 = vdwg.mxu0
    %553 = vmatprep.subr.mxu0 %v110
    %554 = vmatpush1.msra.mxu0 %v109
    %555 = vmatprep.subr.mxu0 %v114
    %556 = vmatpush1.msra.mxu0 %v113
    %557 = vmatprep.subr.mxu0 %v118
    %558 = vmatpush1.msra.mxu0 %v117
    %559 = vmatprep.subr.mxu0 %v122
    %560 = vmatpush1.msra.mxu0 %v121
    %561 = vmatprep.subr.mxu0 %v126
    %562 = vmatpush1.msra.mxu0 %v125
    %563 = vmatprep.subr.mxu0 %v130
    %564 = vmatpush1.msra.mxu0 %v129
    %565 = vmatprep.subr.mxu0 %v134
    %566 = vmatpush1.msra.mxu0 %v133
    %567 = vmatprep.subr.mxu0 %v138
    %568 = vmatpush1.msra.mxu0 %v137
    %569 = vmatprep.subr.mxu0 %v142
    %570 = vmatpush1.msra.mxu0 %v141
    %571 = vmatprep.subr.mxu0 %v146
    %572 = vmatpush1.msra.mxu0 %v145
    %573 = vmatprep.subr.mxu0 %v150
    %574 = vmatpush1.msra.mxu0 %v149
    %575 = vmatprep.subr.mxu0 %v154
    %576 = vmatpush1.msra.mxu0 %v153
    %577 = vmatprep.subr.mxu0 %v158
    %578 = vmatpush1.msra.mxu0 %v157
    %579 = vmatprep.subr.mxu0 %v162
    %580 = vmatpush1.msra.mxu0 %v161
    %581 = vmatprep.subr.mxu0 %v166
    %582 = vmatpush1.msra.mxu0 %v165
    %583 = vmatprep.subr.mxu0 %v170
    %584 = vmatpush1.msra.mxu0 %v169
    %585 = vmatprep.subr.mxu0 %v174
    %586 = vmatpush1.msra.mxu0 %v173
    %587 = vmatprep.subr.mxu0 %v178
    %588 = vmatpush1.msra.mxu0 %v177
    %589 = vmatprep.subr.mxu0 %v182
    %590 = vmatpush1.msra.mxu0 %v181
    %591 = vmatprep.subr.mxu0 %v186
    %592 = vmatpush1.msra.mxu0 %v185
    %593 = vmatprep.subr.mxu0 %v190
    %594 = vmatpush1.msra.mxu0 %v189
    %595 = vmatprep.subr.mxu0 %v194
    %596 = vmatpush1.msra.mxu0 %v193
    %597 = vmatprep.subr.mxu0 %v198
    %598 = vmatpush1.msra.mxu0 %v197
    %599 = vmatprep.subr.mxu0 %v202
    %600 = vmatpush1.msra.mxu0 %v201
    %601 = vmatprep.subr.mxu0 %v206
    %602 = vmatpush1.msra.mxu0 %v205
    %603 = vmatprep.subr.mxu0 %v210
    %604 = vmatpush1.msra.mxu0 %v209
    %605 = vmatprep.subr.mxu0 %v214
    %606 = vmatpush1.msra.mxu0 %v213
    %607 = vmatprep.subr.mxu0 %v218
    %608 = vmatpush1.msra.mxu0 %v217
    %609 = vmatprep.subr.mxu0 %v222
    %610 = vmatpush1.msra.mxu0 %v221
    %611 = vmatprep.subr.mxu0 %v226
    %612 = vmatpush1.msra.mxu0 %v225
    %613 = vmatprep.subr.mxu0 %v230
    %614 = vmatpush1.msra.mxu0 %v229
    %615 = vmatprep.subr.mxu0 %v234
    %616 = vmatpush1.msra.mxu0 %v233
    %617 = vmatprep.mubr.f32.mxu0 %v88
    %618 = vmatmul.mubr.f32.gmra.mrb[0].mxu0 %v87
    %v619 = vpop.f32.mrb[0].mxu0
    %v620 = vadd.f32 0.0, %v619
    %v621 = vpop.f32.mrb[0].mxu0
    %v622 = vadd.f32 0.0, %v621
    %623 = vmatprep.mubr.f32.mxu0 %v92
    %624 = vmatmul.mubr.f32.gmra.mrb[0].mxu0 %v91
    %v625 = vpop.f32.mrb[0].mxu0
    %v626 = vadd.f32 0.0, %v625
    %v627 = vpop.f32.mrb[0].mxu0
    %v628 = vadd.f32 0.0, %v627
    %629 = vmatprep.mubr.f32.mxu0 %v96
    %630 = vmatmul.mubr.f32.gmra.mrb[0].mxu0 %v95
    %v631 = vpop.f32.mrb[0].mxu0
    %v632 = vadd.f32 0.0, %v631
    %v633 = vpop.f32.mrb[0].mxu0
    %v634 = vadd.f32 0.0, %v633
    %635 = vmatprep.mubr.f32.mxu0 %v100
    %636 = vmatmul.mubr.f32.gmra.mrb[0].mxu0 %v99
    %v637 = vpop.f32.mrb[0].mxu0
    %v638 = vadd.f32 0.0, %v637
    %v639 = vpop.f32.mrb[0].mxu0
    %v640 = vadd.f32 0.0, %v639
    %641 = vmatprep.mubr.f32.mxu0 %v104
    %642 = vmatmul.mubr.f32.gmra.mrb[0].mxu0 %v103
    %v643 = vpop.f32.mrb[0].mxu0
    %v644 = vadd.f32 0.0, %v643
    %v645 = vpop.f32.mrb[0].mxu0
    %v646 = vadd.f32 0.0, %v645
    %647 = vdwg.mxu0
    %648 = vmatprep.subr.mxu0 %v238
    %649 = vmatpush1.msra.mxu0 %v237
    %650 = vmatprep.subr.mxu0 %v242
    %651 = vmatpush1.msra.mxu0 %v241
    %652 = vmatprep.subr.mxu0 %v246
    %653 = vmatpush1.msra.mxu0 %v245
    %654 = vmatprep.subr.mxu0 %v250
    %655 = vmatpush1.msra.mxu0 %v249
    %656 = vmatprep.subr.mxu0 %v254
    %657 = vmatpush1.msra.mxu0 %v253
    %658 = vmatprep.subr.mxu0 %v258
    %659 = vmatpush1.msra.mxu0 %v257
    %660 = vmatprep.subr.mxu0 %v262
    %661 = vmatpush1.msra.mxu0 %v261
    %662 = vmatprep.subr.mxu0 %v266
    %663 = vmatpush1.msra.mxu0 %v265
    %664 = vmatprep.subr.mxu0 %v270
    %665 = vmatpush1.msra.mxu0 %v269
    %666 = vmatprep.subr.mxu0 %v274
    %667 = vmatpush1.msra.mxu0 %v273
    %668 = vmatprep.subr.mxu0 %v278
    %669 = vmatpush1.msra.mxu0 %v277
    %670 = vmatprep.subr.mxu0 %v282
    %671 = vmatpush1.msra.mxu0 %v281
    %672 = vmatprep.subr.mxu0 %v286
    %673 = vmatpush1.msra.mxu0 %v285
    %674 = vmatprep.subr.mxu0 %v290
    %675 = vmatpush1.msra.mxu0 %v289
    %676 = vmatprep.subr.mxu0 %v294
    %677 = vmatpush1.msra.mxu0 %v293
    %678 = vmatprep.subr.mxu0 %v298
    %679 = vmatpush1.msra.mxu0 %v297
    %680 = vmatprep.subr.mxu0 %v302
    %681 = vmatpush1.msra.mxu0 %v301
    %682 = vmatprep.subr.mxu0 %v306
    %683 = vmatpush1.msra.mxu0 %v305
    %684 = vmatprep.subr.mxu0 %v310
    %685 = vmatpush1.msra.mxu0 %v309
    %686 = vmatprep.subr.mxu0 %v314
    %687 = vmatpush1.msra.mxu0 %v313
    %688 = vmatprep.subr.mxu0 %v318
    %689 = vmatpush1.msra.mxu0 %v317
    %690 = vmatprep.subr.mxu0 %v322
    %691 = vmatpush1.msra.mxu0 %v321
    %692 = vmatprep.subr.mxu0 %v326
    %693 = vmatpush1.msra.mxu0 %v325
    %694 = vmatprep.subr.mxu0 %v330
    %695 = vmatpush1.msra.mxu0 %v329
    %696 = vmatprep.subr.mxu0 %v334
    %697 = vmatpush1.msra.mxu0 %v333
    %698 = vmatprep.subr.mxu0 %v338
    %699 = vmatpush1.msra.mxu0 %v337
    %700 = vmatprep.subr.mxu0 %v342
    %701 = vmatpush1.msra.mxu0 %v341
    %702 = vmatprep.subr.mxu0 %v346
    %703 = vmatpush1.msra.mxu0 %v345
    %704 = vmatprep.subr.mxu0 %v350
    %705 = vmatpush1.msra.mxu0 %v349
    %706 = vmatprep.subr.mxu0 %v354
    %707 = vmatpush1.msra.mxu0 %v353
    %708 = vmatprep.subr.mxu0 %v358
    %709 = vmatpush1.msra.mxu0 %v357
    %710 = vmatprep.subr.mxu0 %v362
    %711 = vmatpush1.msra.mxu0 %v361
    %712 = vmatprep.mubr.f32.mxu0 %v90
    %713 = vmatmul.mubr.f32.gmra.mrb[0].mxu0 %v89
    %v714 = vpop.f32.mrb[0].mxu0
    %v715 = vadd.f32 %v620, %v714
    %v716 = vpop.f32.mrb[0].mxu0
    %v717 = vadd.f32 %v622, %v716
    %718 = vmatprep.mubr.f32.mxu0 %v94
    %719 = vmatmul.mubr.f32.gmra.mrb[0].mxu0 %v93
    %v720 = vpop.f32.mrb[0].mxu0
    %v721 = vadd.f32 %v626, %v720
    %v722 = vpop.f32.mrb[0].mxu0
    %v723 = vadd.f32 %v628, %v722
    %724 = vmatprep.mubr.f32.mxu0 %v98
    %725 = vmatmul.mubr.f32.gmra.mrb[0].mxu0 %v97
    %v726 = vpop.f32.mrb[0].mxu0
    %v727 = vadd.f32 %v632, %v726
    %v728 = vpop.f32.mrb[0].mxu0
    %v729 = vadd.f32 %v634, %v728
    %730 = vmatprep.mubr.f32.mxu0 %v102
    %731 = vmatmul.mubr.f32.gmra.mrb[0].mxu0 %v101
    %v732 = vpop.f32.mrb[0].mxu0
    %v733 = vadd.f32 %v638, %v732
    %v734 = vpop.f32.mrb[0].mxu0
    %v735 = vadd.f32 %v640, %v734
    %736 = vmatprep.mubr.f32.mxu0 %v106
    %737 = vmatmul.mubr.f32.gmra.mrb[0].mxu0 %v105
    %v738 = vpop.f32.mrb[0].mxu0
    %v739 = vadd.f32 %v644, %v738
    %v740 = vpop.f32.mrb[0].mxu0
    %v741 = vadd.f32 %v646, %v740
    %742 = vdwg.mxu0
    %v743 = vadd.f32 %v67, %v525
    %v744 = vadd.f32 %v68, %v527
    %v745 = vadd.f32 %v69, %v715
    %v746 = vadd.f32 %v70, %v717
    %v747 = vadd.f32 %v71, %v531
    %v748 = vadd.f32 %v72, %v533
    %v749 = vadd.f32 %v73, %v721
    %v750 = vadd.f32 %v74, %v723
    %v751 = vadd.f32 %v75, %v537
    %v752 = vadd.f32 %v76, %v539
    %v753 = vadd.f32 %v77, %v727
    %v754 = vadd.f32 %v78, %v729
    %v755 = vadd.f32 %v79, %v543
    %v756 = vadd.f32 %v80, %v545
    %v757 = vadd.f32 %v81, %v733
    %v758 = vadd.f32 %v82, %v735
    %v759 = vadd.f32 %v83, %v549
    %v760 = vadd.f32 %v84, %v551
    %v761 = vadd.f32 %v85, %v739
    %v762 = vadd.f32 %v86, %v741
    %763 = vst [vmem:[#allocation2] sm:$0xff] %v743
    %764 = vst [vmem:[#allocation2 + $0x8] sm:$0xff] %v744
    %765 = vst [vmem:[#allocation2 + $0x10] sm:$0xff] %v745
    %766 = vst [vmem:[#allocation2 + $0x18] sm:$0xff] %v746
    %767 = vst [vmem:[#allocation2 + $0x20] sm:$0xff] %v747
    %768 = vst [vmem:[#allocation2 + $0x28] sm:$0xff] %v748
    %769 = vst [vmem:[#allocation2 + $0x30] sm:$0xff] %v749
    %770 = vst [vmem:[#allocation2 + $0x38] sm:$0xff] %v750
    %771 = vst [vmem:[#allocation2 + $0x40] sm:$0xff] %v751
    %772 = vst [vmem:[#allocation2 + $0x48] sm:$0xff] %v752
    %773 = vst [vmem:[#allocation2 + $0x50] sm:$0xff] %v753
    %774 = vst [vmem:[#allocation2 + $0x58] sm:$0xff] %v754
    %775 = vst [vmem:[#allocation2 + $0x60] sm:$0xff] %v755
    %776 = vst [vmem:[#allocation2 + $0x68] sm:$0xff] %v756
    %777 = vst [vmem:[#allocation2 + $0x70] sm:$0xff] %v757
    %778 = vst [vmem:[#allocation2 + $0x78] sm:$0xff] %v758
    %779 = vst [vmem:[#allocation2 + $0x80] sm:$0xff] %v759
    %780 = vst [vmem:[#allocation2 + $0x88] sm:$0xff] %v760
    %781 = vst [vmem:[#allocation2 + $0x90] sm:$0xff] %v761
    %782 = vst [vmem:[#allocation2 + $0x98] sm:$0xff] %v762
    // Predicated region
    $region26: #{tpu_custom_call.1} parent=1 // pred_check
      %p783 = pneg %p43
    $region27: #{tpu_custom_call.1} parent=1 // pred_check_branch
      %785 = sbr.rel (%p783) target = $region29
    $region28: #{tpu_custom_call.1} parent=1 // pred_region
      %v786 = vld [vmem:[#allocation2] sm:$0xff]
      %v787 = vld [vmem:[#allocation2 + $0x8] sm:$0xff]
      %v788 = vld [vmem:[#allocation2 + $0x10] sm:$0xff]
      %v789 = vld [vmem:[#allocation2 + $0x18] sm:$0xff]
      %v790 = vld [vmem:[#allocation2 + $0x20] sm:$0xff]
      %v791 = vld [vmem:[#allocation2 + $0x28] sm:$0xff]
      %v792 = vld [vmem:[#allocation2 + $0x30] sm:$0xff]
      %v793 = vld [vmem:[#allocation2 + $0x38] sm:$0xff]
      %v794 = vld [vmem:[#allocation2 + $0x40] sm:$0xff]
      %v795 = vld [vmem:[#allocation2 + $0x48] sm:$0xff]
      %v796 = vld [vmem:[#allocation2 + $0x50] sm:$0xff]
      %v797 = vld [vmem:[#allocation2 + $0x58] sm:$0xff]
      %v798 = vld [vmem:[#allocation2 + $0x60] sm:$0xff]
      %v799 = vld [vmem:[#allocation2 + $0x68] sm:$0xff]
      %v800 = vld [vmem:[#allocation2 + $0x70] sm:$0xff]
      %v801 = vld [vmem:[#allocation2 + $0x78] sm:$0xff]
      %v802 = vld [vmem:[#allocation2 + $0x80] sm:$0xff]
      %v803 = vld [vmem:[#allocation2 + $0x88] sm:$0xff]
      %v804 = vld [vmem:[#allocation2 + $0x90] sm:$0xff]
      %v805 = vld [vmem:[#allocation2 + $0x98] sm:$0xff]
      %v806 = vld [vmem:[%s2] sm:$0xf]
      %v808 = vlaneseq
      %v809 = vshrl.u32 %v808, 7
      %v810 = vsub.s32 0, %v809
      %v811 = vrot.slane %v806, %v810
      %v812 = vlaneseq
      %v813 = vshrl.u32 %v812, 7
      %v814 = vsub.s32 1, %v813
      %v815 = vrot.slane %v806, %v814
      %v816 = vlaneseq
      %v817 = vshrl.u32 %v816, 7
      %v818 = vsub.s32 2, %v817
      %v819 = vrot.slane %v806, %v818
      %v820 = vlaneseq
      %v821 = vshrl.u32 %v820, 7
      %v822 = vsub.s32 3, %v821
      %v823 = vrot.slane %v806, %v822
      %v828 = vadd.f32 %v786, %v811
      %v829 = vadd.f32 %v787, %v815
      %v830 = vadd.f32 %v788, %v819
      %v831 = vadd.f32 %v789, %v823
      %v832 = vadd.f32 %v790, %v811
      %v833 = vadd.f32 %v791, %v815
      %v834 = vadd.f32 %v792, %v819
      %v835 = vadd.f32 %v793, %v823
      %v836 = vadd.f32 %v794, %v811
      %v837 = vadd.f32 %v795, %v815
      %v838 = vadd.f32 %v796, %v819
      %v839 = vadd.f32 %v797, %v823
      %v840 = vadd.f32 %v798, %v811
      %v841 = vadd.f32 %v799, %v815
      %v842 = vadd.f32 %v800, %v819
      %v843 = vadd.f32 %v801, %v823
      %v844 = vadd.f32 %v802, %v811
      %v845 = vadd.f32 %v803, %v815
      %v846 = vadd.f32 %v804, %v819
      %v847 = vadd.f32 %v805, %v823
      %848 = vst [vmem:[#allocation8] sm:$0xff] %v828
      %849 = vst [vmem:[#allocation8 + $0x8] sm:$0xff] %v829
      %850 = vst [vmem:[#allocation8 + $0x10] sm:$0xff] %v830
      %851 = vst [vmem:[#allocation8 + $0x18] sm:$0xff] %v831
      %852 = vst [vmem:[#allocation8 + $0x20] sm:$0xff] %v832
      %853 = vst [vmem:[#allocation8 + $0x28] sm:$0xff] %v833
      %854 = vst [vmem:[#allocation8 + $0x30] sm:$0xff] %v834
      %855 = vst [vmem:[#allocation8 + $0x38] sm:$0xff] %v835
      %856 = vst [vmem:[#allocation8 + $0x40] sm:$0xff] %v836
      %857 = vst [vmem:[#allocation8 + $0x48] sm:$0xff] %v837
      %858 = vst [vmem:[#allocation8 + $0x50] sm:$0xff] %v838
      %859 = vst [vmem:[#allocation8 + $0x58] sm:$0xff] %v839
      %860 = vst [vmem:[#allocation8 + $0x60] sm:$0xff] %v840
      %861 = vst [vmem:[#allocation8 + $0x68] sm:$0xff] %v841
      %862 = vst [vmem:[#allocation8 + $0x70] sm:$0xff] %v842
      %863 = vst [vmem:[#allocation8 + $0x78] sm:$0xff] %v843
      %864 = vst [vmem:[#allocation8 + $0x80] sm:$0xff] %v844
      %865 = vst [vmem:[#allocation8 + $0x88] sm:$0xff] %v845
      %866 = vst [vmem:[#allocation8 + $0x90] sm:$0xff] %v846
      %867 = vst [vmem:[#allocation8 + $0x98] sm:$0xff] %v847
    $region29: #{tpu_custom_call.1} parent=1 // pred_fallthru
      _
    // Predicated region
    $region30: #{tpu_custom_call.1} parent=1 // pred_check
      _
    $region31: #{tpu_custom_call.1} parent=1 // pred_check_branch
      %869 = sbr.rel (0) target = $region33
    $region32: #{tpu_custom_call.1} parent=1 // pred_region
      %s871 = ssub.s32 2560, 2560
      %872 = vsyncadd [#allocation5], %s871
      %s873 = sshll.u32 [#allocation8], 4
      %s874 = int_to_ptr.vmem [resolvable:$true] %s873
      %879 = dma.vmem_to_hbm [thread:$0]  %s874, 2560, %s3, [#allocation5], 512, 512, 32
    $region33: #{tpu_custom_call.1} parent=1 // pred_fallthru
      _
    // Predicated region
    $region34: #{tpu_custom_call.1} parent=1 // pred_check
      _
    $region35: #{tpu_custom_call.1} parent=1 // pred_check_branch
      %881 = sbr.rel (0) target = $region37
    $region36: #{tpu_custom_call.1} parent=1 // pred_region
      %882 = dma.done [#allocation5], 2560
    $region37: #{tpu_custom_call.1} parent=1 // pred_fallthru
      _
    %883 = vsyncpa [#allocation4], 1
    %884 = vsyncpa [#allocation7], 1
    %885 = vsyncpa [#allocation5], 1

</llo_original>
